<compile_context>
chip_gen: v5e
topology: v5e:2x2
jax: 0.10.0
libtpu: 0.0.40
codegen_flags: <defaults>
</compile_context>

<pallas_src>
import functools

import jax
import jax.numpy as jnp
from jax import lax
from jax.experimental import pallas as pl
from jax.experimental.pallas import tpu as pltpu


def _embed_kernel(idx_ref, tbl_ref, out_ref):
    # idx_ref : (tile_n, num_inputs) int32  -- offset-shifted indices
    # tbl_ref : (Cp, Wp)             f32    -- block-diagonal stacked tables
    # out_ref : (tile_n, Wp)         f32    -- fused lane-dense output
    idx = idx_ref[...]                       # (tn, num_inputs)
    tbl = tbl_ref[...]                       # (Cp, Wp)
    tn = out_ref.shape[0]
    cp = tbl.shape[0]
    num_inputs = idx.shape[1]

    # Multi-hot row selector: exactly one hot column per variable (columns are
    # disjoint because offsets were added in the wrapper).  Static unroll over
    # the (small) number of variables; each compare is a full (tn, Cp) vreg op.
    iota = lax.broadcasted_iota(jnp.int32, (tn, cp), 1)
    mh = jnp.zeros((tn, cp), dtype=tbl.dtype)
    for i in range(num_inputs):
        mh = mh + (idx[:, i:i + 1] == iota).astype(tbl.dtype)

    # Block-diagonal table => cross-variable terms multiply zeros, so the
    # result is exactly the per-variable gather.  (For very large C this could
    # be cast to bf16 / replaced by jnp.take; at embedding-table sizes the MXU
    # is not the binding slot.)
    out_ref[...] = jnp.dot(mh, tbl, preferred_element_type=jnp.float32)


def categorical_input_transformation(x, embedding_tables, *, block_n=512):
    """
    x: (N, num_inputs) integer indices.
    embedding_tables: list of (cardinality_i, state_size) float32 arrays.
    Returns: list (len num_inputs) of (N, state_size) float32 arrays.
    """
    num_inputs = len(embedding_tables)
    n = x.shape[0]
    state_size = embedding_tables[0].shape[1]
    cards = [int(t.shape[0]) for t in embedding_tables]

    # Per-variable row offsets into the concatenated (not C_max-padded) table.
    offsets = []
    acc = 0
    for c in cards:
        offsets.append(acc)
        acc += c
    total_c = acc

    # Pad the contraction dim to a multiple of 8 (sublanes) and the fused
    # output width to a multiple of 128 (lanes) so loads/stores are unmasked.
    cp = total_c + ((-total_c) % 8)
    w = num_inputs * state_size
    wp = w + ((-w) % 128)

    # Block-diagonal stacked table (Cp, Wp): variable i occupies rows
    # [off_i, off_i+C_i) and columns [i*S, (i+1)*S).  Built once, param-sized.
    # NOTE: for huge vocabularies this resident block should be tiled along C
    # (reduction grid axis + VMEM accumulator) to respect v7x's 64 MiB VMEM.
    tbl = jnp.zeros((cp, wp), dtype=jnp.float32)
    for i, t in enumerate(embedding_tables):
        tbl = tbl.at[offsets[i]:offsets[i] + cards[i],
                     i * state_size:(i + 1) * state_size].set(t.astype(jnp.float32))

    # Offset-shifted indices, one (N, num_inputs) int32 block.
    # (int64 -> int32 is safe for realistic cardinalities.)
    idx = x.astype(jnp.int32) + jnp.asarray(offsets, dtype=jnp.int32)[None, :]

    # Tile N.  Small batches go through as a single full-extent block; large
    # batches use >=512-row tiles (multiple of 8) to amortize per-step overhead
    # and give v7x's two TensorCores something to split.
    if n <= block_n:
        tn = n
        n_p = n
    else:
        tn = block_n
        n_p = pl.cdiv(n, tn) * tn
    if n_p > n:
        idx = jnp.pad(idx, ((0, n_p - n), (0, 0)))  # pad rows -> garbage rows, sliced off

    out = pl.pallas_call(
        _embed_kernel,
        out_shape=jax.ShapeDtypeStruct((n_p, wp), jnp.float32),
        grid_spec=pltpu.PrefetchScalarGridSpec(
            num_scalar_prefetch=0,
            grid=(n_p // tn,),
            in_specs=[
                # indices: one lane-sparse but tiny block per N-tile
                pl.BlockSpec((tn, num_inputs), lambda j: (j, 0)),
                # table: same block every step -> stays resident in VMEM
                pl.BlockSpec((cp, wp), lambda j: (0, 0)),
            ],
            out_specs=pl.BlockSpec((tn, wp), lambda j: (j, 0)),
        ),
        compiler_params=pltpu.CompilerParams(
            # N-tiles are independent and write disjoint output blocks:
            # "parallel" lets v7x shard them across its 2 TCs (neutral on v5e/v6e).
            dimension_semantics=("parallel",),
        ),
    )(idx, tbl)

    # Strip padding and split the fused (N, num_inputs*S) slab back into the
    # list-of-tensors return type of the PyTorch module (one reshape + views).
    out = out[:n, :w].reshape(n, num_inputs, state_size)
    return [out[:, i, :] for i in range(num_inputs)]


if __name__ == "__main__":
    # Module config (small, consistent with the forward):
    num_inputs = 4
    state_size = 32
    cardinalities = [7, 5, 10, 3]
    batch = 8

    key = jax.random.PRNGKey(0)
    k_tables, k_idx = jax.random.split(key)

    # Deterministic parameter init: nn.Embedding default is N(0, 1).
    table_keys = jax.random.split(k_tables, num_inputs)
    embedding_tables = [
        jax.random.normal(table_keys[i], (cardinalities[i], state_size), dtype=jnp.float32)
        for i in range(num_inputs)
    ]

    # Categorical inputs x: (batch, num_inputs), each column in [0, cardinality_i)
    idx_keys = jax.random.split(k_idx, num_inputs)
    cols = [
        jax.random.randint(idx_keys[i], (batch,), 0, cardinalities[i], dtype=jnp.int32)
        for i in range(num_inputs)
    ]
    x = jnp.stack(cols, axis=1)  # (batch, num_inputs) int32

    # Run kernel
    run = functools.partial(categorical_input_transformation, block_n=512)
    embeddings = run(x, embedding_tables)
    embeddings = [jax.block_until_ready(e) for e in embeddings]

    # Reference check (plain JAX gather), mirrors PyTorch semantics exactly.
    refs = [embedding_tables[i][x[:, i]] for i in range(num_inputs)]
    for e, r in zip(embeddings, refs):
        assert e.shape == (batch, state_size)
        assert jnp.allclose(e, r, atol=1e-5), "mismatch vs reference gather"

    print("KERNEL_OK")
</pallas_src>

<mosaic_0001>
module attributes {stable_mosaic.version = 11 : i64} {
  func.func @_embed_kernel(%arg0: i32, %arg1: memref<8x4xi32, #tpu.memory_space<vmem>>, %arg2: memref<32x128xf32, #tpu.memory_space<vmem>>, %arg3: memref<8x128xf32, #tpu.memory_space<vmem>>) attributes {dimension_semantics = [#tpu.dimension_semantics<parallel>], iteration_bounds = array<i64: 1>, scalar_prefetch = 0 : i64, scratch_operands = 0 : i64, tpu.core_type = #tpu.core_type<tc>, window_params = [{transform_indices = @transform_0, window_bounds = array<i64: 8, 4>}, {pipeline_mode = #tpu.pipeline_mode<synchronous>, transform_indices = @transform_1, window_bounds = array<i64: 32, 128>}, {transform_indices = @transform_2, window_bounds = array<i64: 8, 128>}]} {
    %c0 = arith.constant 0 : index
    %c0_0 = arith.constant 0 : index
    %0 = vector.load %arg1[%c0, %c0_0] : memref<8x4xi32, #tpu.memory_space<vmem>>, vector<8x4xi32>
    %c0_1 = arith.constant 0 : index
    %c0_2 = arith.constant 0 : index
    %1 = vector.load %arg2[%c0_1, %c0_2] : memref<32x128xf32, #tpu.memory_space<vmem>>, vector<32x128xf32>
    %2 = tpu.iota {dimensions = array<i32: 1>} : vector<8x32xi32>
    %cst = arith.constant 0.000000e+00 : f32
    %3 = vector.broadcast %cst : f32 to vector<8x32xf32>
    %4 = vector.extract_strided_slice %0 {offsets = [0, 0], sizes = [8, 1], strides = [1, 1]} : vector<8x4xi32> to vector<8x1xi32>
    %5 = vector.broadcast %4 : vector<8x1xi32> to vector<8x32xi32>
    %6 = arith.cmpi eq, %5, %2 : vector<8x32xi32>
    %7 = arith.extui %6 : vector<8x32xi1> to vector<8x32xi32>
    %8 = arith.sitofp %7 : vector<8x32xi32> to vector<8x32xf32>
    %9 = arith.addf %3, %8 : vector<8x32xf32>
    %10 = vector.extract_strided_slice %0 {offsets = [0, 1], sizes = [8, 1], strides = [1, 1]} : vector<8x4xi32> to vector<8x1xi32>
    %11 = vector.broadcast %10 : vector<8x1xi32> to vector<8x32xi32>
    %12 = arith.cmpi eq, %11, %2 : vector<8x32xi32>
    %13 = arith.extui %12 : vector<8x32xi1> to vector<8x32xi32>
    %14 = arith.sitofp %13 : vector<8x32xi32> to vector<8x32xf32>
    %15 = arith.addf %9, %14 : vector<8x32xf32>
    %16 = vector.extract_strided_slice %0 {offsets = [0, 2], sizes = [8, 1], strides = [1, 1]} : vector<8x4xi32> to vector<8x1xi32>
    %17 = vector.broadcast %16 : vector<8x1xi32> to vector<8x32xi32>
    %18 = arith.cmpi eq, %17, %2 : vector<8x32xi32>
    %19 = arith.extui %18 : vector<8x32xi1> to vector<8x32xi32>
    %20 = arith.sitofp %19 : vector<8x32xi32> to vector<8x32xf32>
    %21 = arith.addf %15, %20 : vector<8x32xf32>
    %22 = vector.extract_strided_slice %0 {offsets = [0, 3], sizes = [8, 1], strides = [1, 1]} : vector<8x4xi32> to vector<8x1xi32>
    %23 = vector.broadcast %22 : vector<8x1xi32> to vector<8x32xi32>
    %24 = arith.cmpi eq, %23, %2 : vector<8x32xi32>
    %25 = arith.extui %24 : vector<8x32xi1> to vector<8x32xi32>
    %26 = arith.sitofp %25 : vector<8x32xi32> to vector<8x32xf32>
    %27 = arith.addf %21, %26 : vector<8x32xf32>
    %cst_3 = arith.constant dense<0.000000e+00> : vector<8x128xf32>
    %28 = tpu.matmul %27, %1, %cst_3 {dimension_numbers = #tpu.dot_dimension_numbers<[1], [0], [0], [1], [0, 0, 1, 1], [], []>} : vector<8x32xf32>, vector<32x128xf32>, vector<8x128xf32> -> vector<8x128xf32>
    %c0_4 = arith.constant 0 : index
    %c0_5 = arith.constant 0 : index
    %29 = vector.load %arg3[%c0_4, %c0_5] : memref<8x128xf32, #tpu.memory_space<vmem>>, vector<8x128xf32>
    tpu.vector_store %arg3[%c0_4, %c0_5], %28 {strides = array<i32>} : memref<8x128xf32, #tpu.memory_space<vmem>>, vector<8x128xf32>,
    return
  }
  func.func @transform_0(%arg0: i32) -> (i32, i32) {
    %c0_i32 = arith.constant 0 : i32
    %c0_i32_0 = arith.constant 0 : i32
    return %arg0, %c0_i32 : i32, i32
  }
  func.func @transform_1(%arg0: i32) -> (i32, i32) {
    %c0_i32 = arith.constant 0 : i32
    %c0_i32_0 = arith.constant 0 : i32
    %c0_i32_1 = arith.constant 0 : i32
    return %c0_i32, %c0_i32_0 : i32, i32
  }
  func.func @transform_2(%arg0: i32) -> (i32, i32) {
    %c0_i32 = arith.constant 0 : i32
    %c0_i32_0 = arith.constant 0 : i32
    return %arg0, %c0_i32 : i32, i32
  }
}

</mosaic_0001>

<llo_original>
// kernel: tpu_custom_call.1
$region0: #{tpu_custom_call.1}
  #allocation0 [shape = 'u32[]', space=smem, size = 0x4, offset = 0x4, fixed_abs, tag = 'smem constant byte address 0x4 - core index']
  #allocation1 [shape = 'u32[72,128]{1,0:T(1,128)}', space=vmem, size = 0x9000, scoped, tag = 'internal scratch']
  %s0 = inlined_call_operand.vmem [shape: s32[8,4], index: 0, kind: input, shape index: {}]
  %s1 = inlined_call_operand.hbm [shape: f32[32,128], index: 1, kind: input, shape index: {}]
  %s2 = inlined_call_operand.hbm [shape: f32[8,128], index: 2, kind: output, shape index: {}]
  %s3 = sld [smem:[#allocation0]]
  $region22: #{tpu_custom_call.1} parent=0
    _
  %s5 = ssub.s32 1, %s3
  %s6 = scalar_select 0, %s5, %s3
  $region1: #{tpu_custom_call.1} parent=0
    #allocation2 [shape = 'u8[16384]{0}', space=vmem, size = 0x4000, scoped, tag = 'input window, operand 1, single buffered']
    #allocation3 [shape = 's32[1]{0}', space=sflag, size = 0x4, scoped, tag = 'scoped memory for tpu_custom_call.1']
    #allocation4 [shape = 's32[1]{0}', space=sflag, size = 0x4, scoped, tag = 'scoped memory for tpu_custom_call.1']
    #allocation5 [shape = 'u8[4096]{0}', space=vmem, size = 0x1000, scoped, tag = 'output window, operand 0, single buffered']
    %7 = vsyncpa [#allocation3], 0
    %8 = vsyncpa [#allocation4], 0
    // Predicated region
    $region2: #{tpu_custom_call.1} parent=1 // pred_check
      _
    $region3: #{tpu_custom_call.1} parent=1 // pred_check_branch
      %10 = sbr.rel (0) target = $region5
    $region4: #{tpu_custom_call.1} parent=1 // pred_region
      _
    $region5: #{tpu_custom_call.1} parent=1 // pred_fallthru
      _
    // Predicated region
    $region6: #{tpu_custom_call.1} parent=1 // pred_check
      _
    $region7: #{tpu_custom_call.1} parent=1 // pred_check_branch
      %12 = sbr.rel (0) target = $region9
    $region8: #{tpu_custom_call.1} parent=1 // pred_region
      %14 = vsyncadd [#allocation3], 0
      %s15 = sshll.u32 %s1, 4
      %s16 = int_to_ptr.hbm [resolvable:$true] %s15
      %s17 = sshll.u32 [#allocation2], 4
      %s18 = int_to_ptr.vmem [resolvable:$true] %s17
      %23 = dma.hbm_to_vmem [thread:$0]  %s16, 512, %s18, [#allocation3], 128, 128, 8
    $region9: #{tpu_custom_call.1} parent=1 // pred_fallthru
      _
    // Predicated region
    $region10: #{tpu_custom_call.1} parent=1 // pred_check
      _
    $region11: #{tpu_custom_call.1} parent=1 // pred_check_branch
      %25 = sbr.rel (0) target = $region13
    $region12: #{tpu_custom_call.1} parent=1 // pred_region
      %27 = dma.done [#allocation3], 512
    $region13: #{tpu_custom_call.1} parent=1 // pred_fallthru
      _
    %v28 = vld [vmem:[%s0] sm:$0xff]
    %v29 = vld [vmem:[#allocation2] sm:$0xff]
    %v30 = vld [vmem:[#allocation2 + $0x8] sm:$0xff]
    %v31 = vld [vmem:[#allocation2 + $0x10] sm:$0xff]
    %v32 = vld [vmem:[#allocation2 + $0x18] sm:$0xff]
    %v33 = vlaneseq
    %v34 = vand.u32 %v33, 127
    %35 = vset.pattern.permute.xlu0 0
    %36 = vperm.xlu0 %35, %v28
    %v37 = vpop.permute.xlu0 %36
    %vm38 = vcmp.eq.s32.totalorder %v37, %v34
    %v39 = vsel %vm38, 1, 0
    %v40 = vcvt.s32.f32 %v39
    %v41 = vadd.f32 %v40, 0.0
    %42 = vset.pattern.permute.xlu0 1
    %43 = vperm.xlu0 %42, %v28
    %v44 = vpop.permute.xlu0 %43
    %vm45 = vcmp.eq.s32.totalorder %v44, %v34
    %v46 = vsel %vm45, 1, 0
    %v47 = vcvt.s32.f32 %v46
    %v48 = vadd.f32 %v41, %v47
    %49 = vset.pattern.permute.xlu0 2
    %50 = vperm.xlu0 %49, %v28
    %v51 = vpop.permute.xlu0 %50
    %vm52 = vcmp.eq.s32.totalorder %v51, %v34
    %v53 = vsel %vm52, 1, 0
    %v54 = vcvt.s32.f32 %v53
    %v55 = vadd.f32 %v48, %v54
    %56 = vset.pattern.permute.xlu0 3
    %57 = vperm.xlu0 %56, %v28
    %v58 = vpop.permute.xlu0 %57
    %vm59 = vcmp.eq.s32.totalorder %v58, %v34
    %v60 = vsel %vm59, 1, 0
    %v61 = vcvt.s32.f32 %v60
    %v62 = vadd.f32 %v55, %v61
    %vm63 = vcmask 261120
    %v65 = vsel %vm63, %v62, 0
    %67 = vmatpush.msra.mxu0 0.0
    %68 = vmatpush.msra.mxu0 0.0
    %69 = vmatpush.msra.mxu0 0.0
    %70 = vmatpush.msra.mxu0 0.0
    %71 = vmatpush.msra.mxu0 0.0
    %72 = vmatpush.msra.mxu0 0.0
    %73 = vmatpush.msra.mxu0 0.0
    %74 = vmatpush.msra.mxu0 0.0
    %75 = vmatpush.msra.mxu0 0.0
    %76 = vmatpush.msra.mxu0 0.0
    %77 = vmatpush.msra.mxu0 0.0
    %78 = vmatpush.msra.mxu0 0.0
    %79 = vmatpush.msra.mxu0 %v32
    %80 = vmatpush.msra.mxu0 %v31
    %81 = vmatpush.msra.mxu0 %v30
    %82 = vmatpush.msra.mxu0 %v29
    %83 = vmatmul.f32.gmra.mxu0 %v65
    %v84 = vpop.f32.mrf.mxu0
    %v85 = vadd.f32 0.0, %v84
    %86 = vdwg.mxu0
    %87 = vst [vmem:[#allocation5] sm:$0xff] %v85
    // Predicated region
    $region14: #{tpu_custom_call.1} parent=1 // pred_check
      _
    $region15: #{tpu_custom_call.1} parent=1 // pred_check_branch
      %89 = sbr.rel (0) target = $region17
    $region16: #{tpu_custom_call.1} parent=1 // pred_region
      %91 = vsyncadd [#allocation4], 0
      %s93 = sshll.u32 [#allocation5], 4
      %s94 = int_to_ptr.vmem [resolvable:$true] %s93
      %s95 = sshll.u32 %s2, 4
      %s96 = int_to_ptr.hbm [resolvable:$true] %s95
      %98 = dma.vmem_to_hbm [thread:$0]  %s94, 128, %s96, [#allocation4]
    $region17: #{tpu_custom_call.1} parent=1 // pred_fallthru
      _
    // Predicated region
    $region18: #{tpu_custom_call.1} parent=1 // pred_check
      _
    $region19: #{tpu_custom_call.1} parent=1 // pred_check_branch
      %100 = sbr.rel (0) target = $region21
    $region20: #{tpu_custom_call.1} parent=1 // pred_region
      %102 = dma.done [#allocation4], 128
    $region21: #{tpu_custom_call.1} parent=1 // pred_fallthru
      _
    %103 = vsyncpa [#allocation3], 1
    %104 = vsyncpa [#allocation4], 1

</llo_original>
